<compile_context>
chip_gen: v7x
topology: tpu7x:2x2x1
jax: 0.10.0
libtpu: 0.0.40
codegen_flags: <defaults>
</compile_context>

<pallas_src>
import jax
import jax.numpy as jnp
from jax.experimental import pallas as pl
from jax.experimental.pallas import tpu as pltpu

_LANE = 1024          # last-dim width: large multiple of 128 (lane-dense)
_MAX_ROW_TILE = 512   # rows per grid step: multiple of 8; 512x1024 f32 = 2 MiB


def _copy_kernel(x_ref, o_ref):
    # Identity copy: the entire squeeze "compute" is a data move.
    o_ref[...] = x_ref[...]


def squeeze_shape(shape, from_dim: int = 0):
    """Shape after torch-style squeeze over dims [from_dim, ndim)."""
    return tuple(d for i, d in enumerate(shape) if i < from_dim or d != 1)


def pallas_squeeze(x: jax.Array, from_dim: int = 0) -> jax.Array:
    out_shape = squeeze_shape(x.shape, from_dim)

    total = 1
    for d in x.shape:
        total *= d

    if total == 0:
        # Degenerate empty tensor: nothing to copy.
        return jnp.reshape(x, out_shape)

    # Flatten row-major and pad up to a full (rows, _LANE) slab so the kernel
    # only ever sees full-width, aligned tiles.
    rows = pl.cdiv(total, _LANE)
    padded = rows * _LANE
    flat = jnp.reshape(x, (total,))
    if padded != total:
        flat = jnp.pad(flat, (0, padded - total))
    x2d = jnp.reshape(flat, (rows, _LANE))

    # Row-tile: full extent when small (always legal), else a multiple of 8.
    tr = rows if rows <= _MAX_ROW_TILE else _MAX_ROW_TILE
    grid = (pl.cdiv(rows, tr),)

    y2d = pl.pallas_call(
        _copy_kernel,
        out_shape=jax.ShapeDtypeStruct((rows, _LANE), x.dtype),
        grid=grid,
        in_specs=[pl.BlockSpec((tr, _LANE), lambda i: (i, 0))],
        out_specs=pl.BlockSpec((tr, _LANE), lambda i: (i, 0)),
        compiler_params=pltpu.CompilerParams(
            # Independent row-tiles: lets v7x shard the copy across both TCs.
            dimension_semantics=("parallel",),
            vmem_limit_bytes=64 << 20,
        ),
    )(x2d)

    y_flat = jnp.reshape(y2d, (padded,))
    if padded != total:
        y_flat = y_flat[:total]
    return jnp.reshape(y_flat, out_shape)


class Squeeze:
    """JAX/Pallas port of the PyTorch Squeeze module (no parameters)."""

    def __init__(self, from_dim: int = 0):
        self.from_dim = from_dim

    def __call__(self, x: jax.Array) -> jax.Array:
        return pallas_squeeze(x, self.from_dim)


if __name__ == "__main__":
    key = jax.random.PRNGKey(0)
    k1, k2 = jax.random.split(key)

    # --- Small NCHW-like tensor with trailing unit dims: (2, 4, 16, 1, 1) ---
    x = jax.random.normal(k1, (2, 4, 16, 1, 1), dtype=jnp.float32)

    # from_dim=0 (module default): drop every size-1 dim -> (2, 4, 16)
    y = jax.block_until_ready(Squeeze(from_dim=0)(x))
    ref = jnp.reshape(x, squeeze_shape(x.shape, 0))
    assert y.shape == (2, 4, 16), y.shape
    assert y.dtype == x.dtype
    assert bool(jnp.array_equal(y, ref))

    # from_dim=3: only dims 3,4 in range (both unit) -> (2, 4, 16)
    y2 = jax.block_until_ready(Squeeze(from_dim=3)(x))
    assert y2.shape == (2, 4, 16), y2.shape
    assert bool(jnp.array_equal(y2, ref))

    # from_dim=4: only the last unit dim is dropped -> (2, 4, 16, 1)
    y3 = jax.block_until_ready(Squeeze(from_dim=4)(x))
    assert y3.shape == (2, 4, 16, 1), y3.shape
    assert bool(jnp.array_equal(y3, jnp.reshape(x, (2, 4, 16, 1))))

    # --- Moderate tensor exercising the multi-tile grid + ragged tail ------
    # total = 4*260*512 = 532480 -> rows = 520 -> grid = (2,) with a partial
    # final row-tile; from_dim=2 keeps the non-unit dim 2 and drops dim 3.
    xb = jax.random.normal(k2, (4, 260, 512, 1), dtype=jnp.float32)
    yb = jax.block_until_ready(Squeeze(from_dim=2)(xb))
    refb = jnp.reshape(xb, squeeze_shape(xb.shape, 2))
    assert yb.shape == (4, 260, 512), yb.shape
    assert bool(jnp.array_equal(yb, refb))

    print("KERNEL_OK")
</pallas_src>

<mosaic_0001>
module attributes {stable_mosaic.version = 11 : i64} {
  func.func @_copy_kernel(%arg0: i32, %arg1: memref<1x1024xf32, #tpu.memory_space<vmem>>, %arg2: memref<1x1024xf32, #tpu.memory_space<vmem>>) attributes {dimension_semantics = [#tpu.dimension_semantics<parallel>], iteration_bounds = array<i64: 1>, scalar_prefetch = 0 : i64, scratch_operands = 0 : i64, tpu.core_type = #tpu.core_type<tc>, window_params = [{transform_indices = @transform_0, window_bounds = array<i64: 1, 1024>}, {transform_indices = @transform_1, window_bounds = array<i64: 1, 1024>}]} {
    %c0 = arith.constant 0 : index
    %c0_0 = arith.constant 0 : index
    %0 = vector.load %arg1[%c0, %c0_0] : memref<1x1024xf32, #tpu.memory_space<vmem>>, vector<1x1024xf32>
    %c0_1 = arith.constant 0 : index
    %c0_2 = arith.constant 0 : index
    %1 = vector.load %arg2[%c0_1, %c0_2] : memref<1x1024xf32, #tpu.memory_space<vmem>>, vector<1x1024xf32>
    tpu.vector_store %arg2[%c0_1, %c0_2], %0 {strides = array<i32>} : memref<1x1024xf32, #tpu.memory_space<vmem>>, vector<1x1024xf32>,
    return
  }
  func.func @transform_0(%arg0: i32) -> (i32, i32) {
    %c0_i32 = arith.constant 0 : i32
    %c0_i32_0 = arith.constant 0 : i32
    return %arg0, %c0_i32 : i32, i32
  }
  func.func @transform_1(%arg0: i32) -> (i32, i32) {
    %c0_i32 = arith.constant 0 : i32
    %c0_i32_0 = arith.constant 0 : i32
    return %arg0, %c0_i32 : i32, i32
  }
}

</mosaic_0001>

<llo_original>
// kernel: tpu_custom_call.1
$region0: #{tpu_custom_call.1}
  #allocation0 [shape = 'u32[]', space=smem, size = 0x4, offset = 0x4, fixed_abs, tag = 'smem constant byte address 0x4 - core index']
  #allocation1 [shape = 'u32[144,128]{1,0:T(1,128)}', space=vmem, size = 0x12000, scoped, tag = 'internal scratch']
  %s0 = inlined_call_operand.hbm [shape: f32[1,1024], index: 0, kind: input, shape index: {}]
  %s1 = inlined_call_operand.hbm [shape: f32[1,1024], index: 1, kind: output, shape index: {}]
  %s2 = sld [smem:[#allocation0]]
  $region18: #{tpu_custom_call.1} parent=0
    _
  %s4 = ssub.s32 1, %s2
  %s5 = scalar_select 0, %s4, %s2
  $region1: #{tpu_custom_call.1} parent=0
    #allocation2 [shape = 'u8[4096]{0}', space=vmem, size = 0x1000, scoped, tag = 'input window, operand 0, single buffered']
    #allocation3 [shape = 's32[1]{0}', space=sflag, size = 0x4, scoped, tag = 'scoped memory for tpu_custom_call.1']
    #allocation4 [shape = 's32[1]{0}', space=sflag, size = 0x4, scoped, tag = 'scoped memory for tpu_custom_call.1']
    #allocation5 [shape = 'u8[4096]{0}', space=vmem, size = 0x1000, scoped, tag = 'output window, operand 0, single buffered']
    %6 = vsyncpa [#allocation3], 0
    %7 = vsyncpa [#allocation4], 0
    // Predicated region
    $region2: #{tpu_custom_call.1} parent=1 // pred_check
      _
    $region3: #{tpu_custom_call.1} parent=1 // pred_check_branch
      %9 = sbr.rel (0) target = $region5
    $region4: #{tpu_custom_call.1} parent=1 // pred_region
      %s11 = ssub.s32 128, 128
      %12 = vsyncadd [#allocation3], %s11
      %s14 = sshll.u32 [#allocation2], 4
      %s15 = int_to_ptr.vmem [resolvable:$true] %s14
      %17 = dma.hbm_to_vmem [thread:$0]  %s0, 128, %s15, [#allocation3]
    $region5: #{tpu_custom_call.1} parent=1 // pred_fallthru
      _
    // Predicated region
    $region6: #{tpu_custom_call.1} parent=1 // pred_check
      _
    $region7: #{tpu_custom_call.1} parent=1 // pred_check_branch
      %19 = sbr.rel (0) target = $region9
    $region8: #{tpu_custom_call.1} parent=1 // pred_region
      %20 = dma.done [#allocation3], 128
    $region9: #{tpu_custom_call.1} parent=1 // pred_fallthru
      _
    %v21 = vld [vmem:[#allocation2] sm:$0xff]
    %22 = vst [vmem:[#allocation5] sm:$0xff] %v21
    // Predicated region
    $region10: #{tpu_custom_call.1} parent=1 // pred_check
      _
    $region11: #{tpu_custom_call.1} parent=1 // pred_check_branch
      %24 = sbr.rel (0) target = $region13
    $region12: #{tpu_custom_call.1} parent=1 // pred_region
      %s26 = ssub.s32 128, 128
      %27 = vsyncadd [#allocation4], %s26
      %s29 = sshll.u32 [#allocation5], 4
      %s30 = int_to_ptr.vmem [resolvable:$true] %s29
      %32 = dma.vmem_to_hbm [thread:$0]  %s30, 128, %s1, [#allocation4]
    $region13: #{tpu_custom_call.1} parent=1 // pred_fallthru
      _
    // Predicated region
    $region14: #{tpu_custom_call.1} parent=1 // pred_check
      _
    $region15: #{tpu_custom_call.1} parent=1 // pred_check_branch
      %34 = sbr.rel (0) target = $region17
    $region16: #{tpu_custom_call.1} parent=1 // pred_region
      %35 = dma.done [#allocation4], 128
    $region17: #{tpu_custom_call.1} parent=1 // pred_fallthru
      _
    %36 = vsyncpa [#allocation3], 1
    %37 = vsyncpa [#allocation4], 1

</llo_original>
